<compile_context>
chip_gen: v7x
topology: tpu7x:2x2x1
jax: 0.10.0
libtpu: 0.0.40
codegen_flags: <defaults>
</compile_context>

<pallas_src>
import functools

import jax
import jax.numpy as jnp
from jax import lax
from jax.experimental import pallas as pl
from jax.experimental.pallas import tpu as pltpu

EPS = 1e-5
NEG_SLOPE = 0.01
F_IN = 64
F_OUT = 32
PACK = 128 // F_OUT          # 4 logical rows packed per 128-lane row
LANES = PACK * F_OUT         # 128
PACKED_IN = PACK * F_IN      # 256


def _round_up(x, m):
    return (x + m - 1) // m * m


def _vmem_capacity_bytes():
    """Per-TensorCore VMEM capacity; conservative (v7x) default if the query is unavailable."""
    try:
        cap = int(pltpu.get_tpu_info().vmem_capacity_bytes)
        if cap > 0:
            return cap
    except Exception:
        pass
    return 64 * 1024 * 1024


# ---------------------------------------------------------------------------
# Fused single-call kernel: phase 0 = h -> VMEM + stats, phase 1 = BN fold + apply.
# ---------------------------------------------------------------------------
def _make_fused_kernel(np_valid, n_true, tp, ragged):
    inv_n = 1.0 / float(n_true)

    def kernel(xp_ref, wb_ref, gb_ref, o_ref, h_ref, s_ref, sq_ref, sc_ref, sh_ref):
        phase = pl.program_id(0)
        i = pl.program_id(1)
        row0 = pl.multiple_of(i * tp, 8)          # tile offset into the resident-h scratch

        @pl.when(jnp.logical_and(phase == 0, i == 0))
        def _init():
            s_ref[...] = jnp.zeros_like(s_ref)
            sq_ref[...] = jnp.zeros_like(sq_ref)

        @pl.when(phase == 0)
        def _stats():
            # packed (tp, 128) Linear activations (bias dropped: cancels against BN mean).
            h = jnp.dot(xp_ref[...], wb_ref[...], preferred_element_type=jnp.float32)
            if ragged:  # static: only the last tile can have invalid (garbage) rows
                rows = lax.broadcasted_iota(jnp.int32, (tp, 1), 0) + i * tp
                h = jnp.where(rows < np_valid, h, 0.0)
            h_ref[pl.ds(row0, tp), :] = h
            # Batch reductions on the otherwise ~idle MXU instead of the XLU.
            ones = jnp.ones((1, tp), jnp.float32)
            s_ref[...] += jnp.dot(ones, h, preferred_element_type=jnp.float32)
            sq_ref[...] += jnp.dot(ones, h * h, preferred_element_type=jnp.float32)

        @pl.when(jnp.logical_and(phase == 1, i == 0))
        def _fold():
            # One-time BN fold.  Group-sum matrix G[l,m] = (l % 32 == m % 32): a single tiny
            # MXU matmul replicates the full per-feature batch totals into every lane group.
            li = lax.broadcasted_iota(jnp.int32, (LANES, LANES), 0) % F_OUT
            lj = lax.broadcasted_iota(jnp.int32, (LANES, LANES), 1) % F_OUT
            G = (li == lj).astype(jnp.float32)
            s = jnp.dot(s_ref[...], G, preferred_element_type=jnp.float32)    # (1, 128)
            sq = jnp.dot(sq_ref[...], G, preferred_element_type=jnp.float32)  # (1, 128)
            mean = s * inv_n
            var = jnp.maximum(sq * inv_n - mean * mean, 0.0)   # biased var (PyTorch BN norm)
            inv_std = lax.rsqrt(var + EPS)
            scale = gb_ref[0:1, :] * inv_std                   # gamma * inv_std
            sc_ref[...] = scale
            sh_ref[...] = gb_ref[1:2, :] - mean * scale        # beta - mean * scale

        @pl.when(phase == 1)
        def _apply():
            h = h_ref[pl.ds(row0, tp), :]                      # no HBM re-read of x
            y = h * sc_ref[...] + sh_ref[...]
            o_ref[...] = jnp.maximum(y, NEG_SLOPE * y).astype(o_ref.dtype)

    return kernel


# ---------------------------------------------------------------------------
# Fallback (huge batch): two streaming passes over x.
# ---------------------------------------------------------------------------
def _make_stats_kernel(np_valid, tp, ragged):
    def kernel(xp_ref, wb_ref, sums_ref):
        i = pl.program_id(0)

        @pl.when(i == 0)
        def _():
            sums_ref[...] = jnp.zeros_like(sums_ref)           # accumulate into resident output

        h = jnp.dot(xp_ref[...], wb_ref[...], preferred_element_type=jnp.float32)
        if ragged:
            rows = lax.broadcasted_iota(jnp.int32, (tp, 1), 0) + i * tp
            h = jnp.where(rows < np_valid, h, 0.0)
        ones = jnp.ones((1, tp), jnp.float32)
        s = jnp.dot(ones, h, preferred_element_type=jnp.float32)
        sq = jnp.dot(ones, h * h, preferred_element_type=jnp.float32)
        sums_ref[...] += jnp.concatenate([s, sq], axis=0)      # (2, 128)

    return kernel


def _apply_kernel(xp_ref, wb_ref, ss_ref, o_ref):
    h = jnp.dot(xp_ref[...], wb_ref[...], preferred_element_type=jnp.float32)
    y = h * ss_ref[0:1, :] + ss_ref[1:2, :]
    o_ref[...] = jnp.maximum(y, NEG_SLOPE * y).astype(o_ref.dtype)


# ---------------------------------------------------------------------------
# Forward
# ---------------------------------------------------------------------------
@functools.partial(jax.jit, static_argnames=("block_rows", "force_two_pass"))
def dsfe_forward(x, w, b, gamma, beta, *, block_rows=8192, force_two_pass=False):
    """y = LeakyReLU(BatchNorm1d_train(Linear(x))).

    `b` (the Linear bias) is accepted for interface parity but is mathematically irrelevant:
    training-mode BatchNorm subtracts the batch mean, which cancels any per-feature constant
    added before it.  (This kernel must never be reused for eval-mode BN with running stats.)
    """
    del b
    N, f_in = x.shape
    assert f_in == F_IN and w.shape == (F_IN, F_OUT)

    # --- packed (lane-dense) view of x: 4 logical rows per 128-lane row ---------------------
    if N % PACK != 0:
        # TODO(synk): rare ragged-by-<4 path still pays one HBM copy (+ output slice); a fully
        # copy-free variant would special-case the last <4 rows inside the kernels.
        n4 = _round_up(N, PACK)
        x = jnp.pad(x, ((0, n4 - N), (0, 0)))   # zero rows: h == 0 (no bias) -> stats-safe
    else:
        n4 = N
    np_rows = n4 // PACK
    x_packed = x.astype(jnp.float32).reshape(np_rows, PACKED_IN)   # contiguous => free view

    # Block-diagonal weights (256, 128): column j*32+f <- feature f of logical row 4r+j,
    # so every kernel output store is a full 128-lane vreg (important on v5e: 1 vst slot).
    w_block = jnp.kron(jnp.eye(PACK, dtype=jnp.float32), w.astype(jnp.float32))
    # gamma/beta in packed layout, as ONE pinned (2, 128) operand.
    gb = jnp.stack([jnp.tile(gamma.astype(jnp.float32), PACK),
                    jnp.tile(beta.astype(jnp.float32), PACK)])

    # --- tiling ------------------------------------------------------------------------------
    tile_rows = _round_up(min(block_rows, _round_up(n4, PACK * 8)), PACK * 8)
    tp = tile_rows // PACK                              # packed rows per tile (multiple of 8)
    num_tiles = pl.cdiv(np_rows, tp)
    ragged = (np_rows % tp) != 0

    cap = _vmem_capacity_bytes()
    vmem_limit = max(32 << 20, cap - (6 << 20))         # per-generation limit, with headroom

    fused_vmem = (num_tiles * tp * LANES * 4            # VMEM-resident h
                  + 2 * tp * PACKED_IN * 4              # x tile double-buffer
                  + 2 * tp * LANES * 4                  # y tile double-buffer
                  + 2 * w_block.size * 4                # pinned weights (double-buffered)
                  + 8 * 8 * LANES * 4)                  # small operands / scratch (padded)
    use_fused = (not force_two_pass) and fused_vmem <= vmem_limit - (4 << 20)

    if use_fused:
        # --- single fused pallas_call: x is read from HBM exactly once ----------------------
        y_packed = pl.pallas_call(
            _make_fused_kernel(np_rows, N, tp, ragged),
            out_shape=jax.ShapeDtypeStruct((np_rows, LANES), jnp.float32),
            grid=(2, num_tiles),                         # (phase, tile), both sequential
            in_specs=[
                # phase 0: tile i; phase 1: pinned at the last tile -> no re-reads of x.
                pl.BlockSpec((tp, PACKED_IN),
                             lambda p, i: (i + p * (num_tiles - 1 - i), 0)),
                pl.BlockSpec(w_block.shape, lambda p, i: (0, 0)),     # pinned in VMEM
                pl.BlockSpec((2, LANES), lambda p, i: (0, 0)),        # pinned gamma/beta
            ],
            # phase 0: constant block index -> no garbage write-backs; phase 1: tile i.
            out_specs=pl.BlockSpec((tp, LANES), lambda p, i: (p * i, 0)),
            scratch_shapes=[
                pltpu.VMEM((num_tiles * tp, LANES), jnp.float32),     # resident h
                pltpu.VMEM((1, LANES), jnp.float32),                  # sum(h)
                pltpu.VMEM((1, LANES), jnp.float32),                  # sum(h*h)
                pltpu.VMEM((1, LANES), jnp.float32),                  # scale
                pltpu.VMEM((1, LANES), jnp.float32),                  # shift
            ],
            compiler_params=pltpu.CompilerParams(
                dimension_semantics=("arbitrary", "arbitrary"),
                vmem_limit_bytes=vmem_limit),
        )(x_packed, w_block, gb)
    else:
        # --- fallback: two streaming passes over x ------------------------------------------
        sums = pl.pallas_call(
            _make_stats_kernel(np_rows, tp, ragged),
            out_shape=jax.ShapeDtypeStruct((2, LANES), jnp.float32),
            grid=(num_tiles,),
            in_specs=[
                pl.BlockSpec((tp, PACKED_IN), lambda i: (i, 0)),
                pl.BlockSpec(w_block.shape, lambda i: (0, 0)),        # pinned
            ],
            out_specs=pl.BlockSpec((2, LANES), lambda i: (0, 0)),     # resident accumulator
            compiler_params=pltpu.CompilerParams(
                dimension_semantics=("arbitrary",), vmem_limit_bytes=vmem_limit),
        )(x_packed, w_block)

        # Tiny (32-wide) BN fold in XLA; fuses under jit.
        s = sums[0].reshape(PACK, F_OUT).sum(axis=0)
        sq = sums[1].reshape(PACK, F_OUT).sum(axis=0)
        mean = s / N
        var = jnp.maximum(sq / N - mean * mean, 0.0)
        inv_std = lax.rsqrt(var + EPS)
        scale = gamma.astype(jnp.float32) * inv_std
        shift = beta.astype(jnp.float32) - mean * scale
        ss = jnp.stack([jnp.tile(scale, PACK), jnp.tile(shift, PACK)])

        y_packed = pl.pallas_call(
            _apply_kernel,
            out_shape=jax.ShapeDtypeStruct((np_rows, LANES), jnp.float32),
            grid=(num_tiles,),
            in_specs=[
                pl.BlockSpec((tp, PACKED_IN), lambda i: (i, 0)),
                pl.BlockSpec(w_block.shape, lambda i: (0, 0)),        # pinned
                pl.BlockSpec((2, LANES), lambda i: (0, 0)),           # pinned scale/shift
            ],
            out_specs=pl.BlockSpec((tp, LANES), lambda i: (i, 0)),    # lane-dense stores
            compiler_params=pltpu.CompilerParams(
                dimension_semantics=("parallel",), vmem_limit_bytes=vmem_limit),
        )(x_packed, w_block, ss)

    y = y_packed.reshape(n4, F_OUT)                     # contiguous => free view
    return y if n4 == N else y[:N]


def reference_forward(x, w, b, gamma, beta):
    h = x @ w + b
    mean = h.mean(axis=0, keepdims=True)
    var = ((h - mean) ** 2).mean(axis=0, keepdims=True)   # biased, like PyTorch BN normalization
    y = (h - mean) / jnp.sqrt(var + EPS) * gamma + beta
    return jnp.where(y > 0, y, NEG_SLOPE * y)


if __name__ == "__main__":
    key = jax.random.PRNGKey(0)
    k_x, k_w, k_b, k_g, k_be = jax.random.split(key, 5)

    bound = F_IN ** -0.5
    w = jax.random.uniform(k_w, (F_IN, F_OUT), jnp.float32, -bound, bound)
    b = jax.random.uniform(k_b, (F_OUT,), jnp.float32, -bound, bound)
    gamma = jnp.ones((F_OUT,), jnp.float32) + 0.1 * jax.random.normal(k_g, (F_OUT,))
    beta = 0.1 * jax.random.normal(k_be, (F_OUT,))

    # Batch deliberately NOT a tile multiple -> exercises in-kernel ragged masking (no host pad).
    BATCH = 500
    BLOCK_ROWS = 128   # small tiles so the demo runs several grid steps (prod default: 8192)
    x = jax.random.normal(k_x, (BATCH, F_IN), jnp.float32)
    ref = reference_forward(x, w, b, gamma, beta)

    # 1) fused single-call path
    out = jax.block_until_ready(dsfe_forward(x, w, b, gamma, beta, block_rows=BLOCK_ROWS))
    assert out.shape == (BATCH, F_OUT)
    assert jnp.allclose(out, ref, atol=1e-4, rtol=1e-4), "fused path mismatch vs reference"

    # 2) two-pass fallback path (forced, to verify it as well)
    out2 = jax.block_until_ready(
        dsfe_forward(x, w, b, gamma, beta, block_rows=BLOCK_ROWS, force_two_pass=True))
    assert jnp.allclose(out2, ref, atol=1e-4, rtol=1e-4), "two-pass path mismatch vs reference"

    # 3) batch not a multiple of 4 -> exercises the (rare) PACK-padding path
    x3 = x[:497]
    ref3 = reference_forward(x3, w, b, gamma, beta)
    out3 = jax.block_until_ready(dsfe_forward(x3, w, b, gamma, beta, block_rows=BLOCK_ROWS))
    assert out3.shape == (497, F_OUT)
    assert jnp.allclose(out3, ref3, atol=1e-4, rtol=1e-4), "ragged-batch path mismatch"

    print("KERNEL_OK")
</pallas_src>

<mosaic_0001>
module attributes {stable_mosaic.version = 11 : i64} {
  func.func @kernel(%arg0: i32, %arg1: i32, %arg2: memref<32x256xf32, #tpu.memory_space<vmem>>, %arg3: memref<256x128xf32, #tpu.memory_space<vmem>>, %arg4: memref<2x128xf32, #tpu.memory_space<vmem>>, %arg5: memref<32x128xf32, #tpu.memory_space<vmem>>, %arg6: memref<128x128xf32, #tpu.memory_space<vmem>>, %arg7: memref<1x128xf32, #tpu.memory_space<vmem>>, %arg8: memref<1x128xf32, #tpu.memory_space<vmem>>, %arg9: memref<1x128xf32, #tpu.memory_space<vmem>>, %arg10: memref<1x128xf32, #tpu.memory_space<vmem>>) attributes {dimension_semantics = [#tpu.dimension_semantics<arbitrary>, #tpu.dimension_semantics<arbitrary>], iteration_bounds = array<i64: 2, 4>, scalar_prefetch = 0 : i64, scratch_operands = 5 : i64, tpu.core_type = #tpu.core_type<tc>, window_params = [{transform_indices = @transform_0, window_bounds = array<i64: 32, 256>}, {pipeline_mode = #tpu.pipeline_mode<synchronous>, transform_indices = @transform_1, window_bounds = array<i64: 256, 128>}, {pipeline_mode = #tpu.pipeline_mode<synchronous>, transform_indices = @transform_2, window_bounds = array<i64: 2, 128>}, {transform_indices = @transform_3, window_bounds = array<i64: 32, 128>}]} {
    %c32_i32 = arith.constant 32 : i32
    %0 = arith.muli %arg1, %c32_i32 : i32
    %1 = tpu.assume_multiple %0, 8 : i32
    %c0_i32 = arith.constant 0 : i32
    %2 = arith.cmpi eq, %arg0, %c0_i32 : i32
    %c0_i32_0 = arith.constant 0 : i32
    %3 = arith.cmpi eq, %arg1, %c0_i32_0 : i32
    %4 = arith.andi %2, %3 : i1
    %5 = arith.extui %4 : i1 to i32
    %c0_i32_1 = arith.constant 0 : i32
    %6 = arith.cmpi ne, %5, %c0_i32_1 : i32
    scf.if %6 {
      %cst = arith.constant 0.000000e+00 : f32
      %18 = vector.broadcast %cst : f32 to vector<1x128xf32>
      %c0 = arith.constant 0 : index
      %c0_8 = arith.constant 0 : index
      %19 = vector.load %arg7[%c0, %c0_8] : memref<1x128xf32, #tpu.memory_space<vmem>>, vector<1x128xf32>
      tpu.vector_store %arg7[%c0, %c0_8], %18 {strides = array<i32>} : memref<1x128xf32, #tpu.memory_space<vmem>>, vector<1x128xf32>,
      %cst_9 = arith.constant 0.000000e+00 : f32
      %20 = vector.broadcast %cst_9 : f32 to vector<1x128xf32>
      %c0_10 = arith.constant 0 : index
      %c0_11 = arith.constant 0 : index
      %21 = vector.load %arg8[%c0_10, %c0_11] : memref<1x128xf32, #tpu.memory_space<vmem>>, vector<1x128xf32>
      tpu.vector_store %arg8[%c0_10, %c0_11], %20 {strides = array<i32>} : memref<1x128xf32, #tpu.memory_space<vmem>>, vector<1x128xf32>,
    } else {
    }
    %c0_i32_2 = arith.constant 0 : i32
    %7 = arith.cmpi eq, %arg0, %c0_i32_2 : i32
    %8 = arith.extui %7 : i1 to i32
    %c0_i32_3 = arith.constant 0 : i32
    %9 = arith.cmpi ne, %8, %c0_i32_3 : i32
    scf.if %9 {
      %c0 = arith.constant 0 : index
      %c0_8 = arith.constant 0 : index
      %18 = vector.load %arg2[%c0, %c0_8] : memref<32x256xf32, #tpu.memory_space<vmem>>, vector<32x256xf32>
      %c0_9 = arith.constant 0 : index
      %c0_10 = arith.constant 0 : index
      %19 = vector.load %arg3[%c0_9, %c0_10] : memref<256x128xf32, #tpu.memory_space<vmem>>, vector<256x128xf32>
      %cst = arith.constant dense<0.000000e+00> : vector<32x128xf32>
      %20 = tpu.matmul %18, %19, %cst {dimension_numbers = #tpu.dot_dimension_numbers<[1], [0], [0], [1], [0, 0, 1, 1], [], []>} : vector<32x256xf32>, vector<256x128xf32>, vector<32x128xf32> -> vector<32x128xf32>
      %21 = tpu.iota {dimensions = array<i32: 0>} : vector<32x1xi32>
      %c32_i32_11 = arith.constant 32 : i32
      %22 = arith.muli %arg1, %c32_i32_11 : i32
      %23 = vector.broadcast %22 : i32 to vector<32x1xi32>
      %24 = arith.addi %21, %23 : vector<32x1xi32>
      %c125_i32 = arith.constant 125 : i32
      %25 = vector.broadcast %c125_i32 : i32 to vector<32x1xi32>
      %26 = arith.cmpi slt, %24, %25 : vector<32x1xi32>
      %cst_12 = arith.constant 0.000000e+00 : f32
      %27 = vector.shape_cast %26 : vector<32x1xi1> to vector<32x1xi1>
      %28 = vector.broadcast %27 : vector<32x1xi1> to vector<32x128xi1>
      %29 = vector.broadcast %cst_12 : f32 to vector<32x128xf32>
      %30 = arith.select %28, %20, %29 : vector<32x128xi1>, vector<32x128xf32>
      %31 = arith.index_cast %1 : i32 to index
      %c0_13 = arith.constant 0 : index
      %32 = vector.load %arg6[%31, %c0_13] : memref<128x128xf32, #tpu.memory_space<vmem>>, vector<32x128xf32>
      tpu.vector_store %arg6[%31, %c0_13], %30 {strides = array<i32>} : memref<128x128xf32, #tpu.memory_space<vmem>>, vector<32x128xf32>,
      %cst_14 = arith.constant 1.000000e+00 : f32
      %33 = vector.broadcast %cst_14 : f32 to vector<1x32xf32>
      %c0_15 = arith.constant 0 : index
      %c0_16 = arith.constant 0 : index
      %34 = vector.load %arg7[%c0_15, %c0_16] : memref<1x128xf32, #tpu.memory_space<vmem>>, vector<1x128xf32>
      %cst_17 = arith.constant dense<0.000000e+00> : vector<1x128xf32>
      %35 = tpu.matmul %33, %30, %cst_17 {dimension_numbers = #tpu.dot_dimension_numbers<[1], [0], [0], [1], [0, 0, 1, 1], [], []>} : vector<1x32xf32>, vector<32x128xf32>, vector<1x128xf32> -> vector<1x128xf32>
      %36 = arith.addf %34, %35 : vector<1x128xf32>
      %c0_18 = arith.constant 0 : index
      %c0_19 = arith.constant 0 : index
      %37 = vector.load %arg7[%c0_18, %c0_19] : memref<1x128xf32, #tpu.memory_space<vmem>>, vector<1x128xf32>
      tpu.vector_store %arg7[%c0_18, %c0_19], %36 {strides = array<i32>} : memref<1x128xf32, #tpu.memory_space<vmem>>, vector<1x128xf32>,
      %c0_20 = arith.constant 0 : index
      %c0_21 = arith.constant 0 : index
      %38 = vector.load %arg8[%c0_20, %c0_21] : memref<1x128xf32, #tpu.memory_space<vmem>>, vector<1x128xf32>
      %39 = arith.mulf %30, %30 : vector<32x128xf32>
      %cst_22 = arith.constant dense<0.000000e+00> : vector<1x128xf32>
      %40 = tpu.matmul %33, %39, %cst_22 {dimension_numbers = #tpu.dot_dimension_numbers<[1], [0], [0], [1], [0, 0, 1, 1], [], []>} : vector<1x32xf32>, vector<32x128xf32>, vector<1x128xf32> -> vector<1x128xf32>
      %41 = arith.addf %38, %40 : vector<1x128xf32>
      %c0_23 = arith.constant 0 : index
      %c0_24 = arith.constant 0 : index
      %42 = vector.load %arg8[%c0_23, %c0_24] : memref<1x128xf32, #tpu.memory_space<vmem>>, vector<1x128xf32>
      tpu.vector_store %arg8[%c0_23, %c0_24], %41 {strides = array<i32>} : memref<1x128xf32, #tpu.memory_space<vmem>>, vector<1x128xf32>,
    } else {
    }
    %c1_i32 = arith.constant 1 : i32
    %10 = arith.cmpi eq, %arg0, %c1_i32 : i32
    %c0_i32_4 = arith.constant 0 : i32
    %11 = arith.cmpi eq, %arg1, %c0_i32_4 : i32
    %12 = arith.andi %10, %11 : i1
    %13 = arith.extui %12 : i1 to i32
    %c0_i32_5 = arith.constant 0 : i32
    %14 = arith.cmpi ne, %13, %c0_i32_5 : i32
    scf.if %14 {
      %18 = tpu.iota {dimensions = array<i32: 0>} : vector<128x128xi32>
      %c32_i32_8 = arith.constant 32 : i32
      %c0_i32_9 = arith.constant 0 : i32
      %19 = arith.cmpi eq, %c32_i32_8, %c0_i32_9 : i32
      %c1_i32_10 = arith.constant 1 : i32
      %20 = arith.select %19, %c1_i32_10, %c32_i32_8 : i32
      %21 = vector.broadcast %20 : i32 to vector<128x128xi32>
      %22 = arith.remsi %18, %21 : vector<128x128xi32>
      %c0_i32_11 = arith.constant 0 : i32
      %23 = vector.broadcast %c0_i32_11 : i32 to vector<128x128xi32>
      %24 = arith.cmpi ne, %22, %23 : vector<128x128xi32>
      %c0_i32_12 = arith.constant 0 : i32
      %25 = vector.broadcast %c0_i32_12 : i32 to vector<128x128xi32>
      %26 = arith.cmpi slt, %22, %25 : vector<128x128xi32>
      %c0_i32_13 = arith.constant 0 : i32
      %27 = arith.cmpi slt, %20, %c0_i32_13 : i32
      %28 = vector.broadcast %27 : i1 to vector<128x128xi1>
      %29 = vector.broadcast %28 : vector<128x128xi1> to vector<128x128xi1>
      %30 = arith.xori %26, %29 : vector<128x128xi1>
      %31 = arith.andi %30, %24 : vector<128x128xi1>
      %32 = vector.broadcast %20 : i32 to vector<128x128xi32>
      %33 = arith.addi %22, %32 : vector<128x128xi32>
      %34 = arith.select %31, %33, %22 : vector<128x128xi1>, vector<128x128xi32>
      %35 = tpu.iota {dimensions = array<i32: 1>} : vector<128x128xi32>
      %c32_i32_14 = arith.constant 32 : i32
      %c0_i32_15 = arith.constant 0 : i32
      %36 = arith.cmpi eq, %c32_i32_14, %c0_i32_15 : i32
      %c1_i32_16 = arith.constant 1 : i32
      %37 = arith.select %36, %c1_i32_16, %c32_i32_14 : i32
      %38 = vector.broadcast %37 : i32 to vector<128x128xi32>
      %39 = arith.remsi %35, %38 : vector<128x128xi32>
      %c0_i32_17 = arith.constant 0 : i32
      %40 = vector.broadcast %c0_i32_17 : i32 to vector<128x128xi32>
      %41 = arith.cmpi ne, %39, %40 : vector<128x128xi32>
      %c0_i32_18 = arith.constant 0 : i32
      %42 = vector.broadcast %c0_i32_18 : i32 to vector<128x128xi32>
      %43 = arith.cmpi slt, %39, %42 : vector<128x128xi32>
      %c0_i32_19 = arith.constant 0 : i32
      %44 = arith.cmpi slt, %37, %c0_i32_19 : i32
      %45 = vector.broadcast %44 : i1 to vector<128x128xi1>
      %46 = vector.broadcast %45 : vector<128x128xi1> to vector<128x128xi1>
      %47 = arith.xori %43, %46 : vector<128x128xi1>
      %48 = arith.andi %47, %41 : vector<128x128xi1>
      %49 = vector.broadcast %37 : i32 to vector<128x128xi32>
      %50 = arith.addi %39, %49 : vector<128x128xi32>
      %51 = arith.select %48, %50, %39 : vector<128x128xi1>, vector<128x128xi32>
      %52 = arith.cmpi eq, %34, %51 : vector<128x128xi32>
      %53 = arith.extui %52 : vector<128x128xi1> to vector<128x128xi32>
      %54 = arith.sitofp %53 : vector<128x128xi32> to vector<128x128xf32>
      %c0 = arith.constant 0 : index
      %c0_20 = arith.constant 0 : index
      %55 = vector.load %arg7[%c0, %c0_20] : memref<1x128xf32, #tpu.memory_space<vmem>>, vector<1x128xf32>
      %cst = arith.constant dense<0.000000e+00> : vector<1x128xf32>
      %56 = tpu.matmul %55, %54, %cst {dimension_numbers = #tpu.dot_dimension_numbers<[1], [0], [0], [1], [0, 0, 1, 1], [], []>} : vector<1x128xf32>, vector<128x128xf32>, vector<1x128xf32> -> vector<1x128xf32>
      %c0_21 = arith.constant 0 : index
      %c0_22 = arith.constant 0 : index
      %57 = vector.load %arg8[%c0_21, %c0_22] : memref<1x128xf32, #tpu.memory_space<vmem>>, vector<1x128xf32>
      %cst_23 = arith.constant dense<0.000000e+00> : vector<1x128xf32>
      %58 = tpu.matmul %57, %54, %cst_23 {dimension_numbers = #tpu.dot_dimension_numbers<[1], [0], [0], [1], [0, 0, 1, 1], [], []>} : vector<1x128xf32>, vector<128x128xf32>, vector<1x128xf32> -> vector<1x128xf32>
      %cst_24 = arith.constant 2.000000e-03 : f32
      %59 = vector.broadcast %cst_24 : f32 to vector<1x128xf32>
      %60 = arith.mulf %56, %59 : vector<1x128xf32>
      %cst_25 = arith.constant 2.000000e-03 : f32
      %61 = vector.broadcast %cst_25 : f32 to vector<1x128xf32>
      %62 = arith.mulf %58, %61 : vector<1x128xf32>
      %63 = arith.mulf %60, %60 : vector<1x128xf32>
      %64 = arith.subf %62, %63 : vector<1x128xf32>
      %cst_26 = arith.constant 0.000000e+00 : f32
      %65 = vector.broadcast %cst_26 : f32 to vector<1x128xf32>
      %66 = arith.maximumf %64, %65 : vector<1x128xf32>
      %cst_27 = arith.constant 9.99999974E-6 : f32
      %67 = vector.broadcast %cst_27 : f32 to vector<1x128xf32>
      %68 = arith.addf %66, %67 : vector<1x128xf32>
      %69 = math.rsqrt %68 : vector<1x128xf32>
      %c0_28 = arith.constant 0 : index
      %c0_29 = arith.constant 0 : index
      %70 = vector.load %arg4[%c0_28, %c0_29] : memref<2x128xf32, #tpu.memory_space<vmem>>, vector<1x128xf32>
      %71 = arith.mulf %70, %69 : vector<1x128xf32>
      %c0_30 = arith.constant 0 : index
      %c0_31 = arith.constant 0 : index
      %72 = vector.load %arg9[%c0_30, %c0_31] : memref<1x128xf32, #tpu.memory_space<vmem>>, vector<1x128xf32>
      tpu.vector_store %arg9[%c0_30, %c0_31], %71 {strides = array<i32>} : memref<1x128xf32, #tpu.memory_space<vmem>>, vector<1x128xf32>,
      %c1 = arith.constant 1 : index
      %c0_32 = arith.constant 0 : index
      %73 = vector.load %arg4[%c1, %c0_32] : memref<2x128xf32, #tpu.memory_space<vmem>>, vector<1x128xf32>
      %74 = arith.mulf %60, %71 : vector<1x128xf32>
      %75 = arith.subf %73, %74 : vector<1x128xf32>
      %c0_33 = arith.constant 0 : index
      %c0_34 = arith.constant 0 : index
      %76 = vector.load %arg10[%c0_33, %c0_34] : memref<1x128xf32, #tpu.memory_space<vmem>>, vector<1x128xf32>
      tpu.vector_store %arg10[%c0_33, %c0_34], %75 {strides = array<i32>} : memref<1x128xf32, #tpu.memory_space<vmem>>, vector<1x128xf32>,
    } else {
    }
    %c1_i32_6 = arith.constant 1 : i32
    %15 = arith.cmpi eq, %arg0, %c1_i32_6 : i32
    %16 = arith.extui %15 : i1 to i32
    %c0_i32_7 = arith.constant 0 : i32
    %17 = arith.cmpi ne, %16, %c0_i32_7 : i32
    scf.if %17 {
      %18 = arith.index_cast %1 : i32 to index
      %c0 = arith.constant 0 : index
      %19 = vector.load %arg6[%18, %c0] : memref<128x128xf32, #tpu.memory_space<vmem>>, vector<32x128xf32>
      %c0_8 = arith.constant 0 : index
      %c0_9 = arith.constant 0 : index
      %20 = vector.load %arg9[%c0_8, %c0_9] : memref<1x128xf32, #tpu.memory_space<vmem>>, vector<1x128xf32>
      %21 = vector.broadcast %20 : vector<1x128xf32> to vector<32x128xf32>
      %22 = arith.mulf %19, %21 : vector<32x128xf32>
      %c0_10 = arith.constant 0 : index
      %c0_11 = arith.constant 0 : index
      %23 = vector.load %arg10[%c0_10, %c0_11] : memref<1x128xf32, #tpu.memory_space<vmem>>, vector<1x128xf32>
      %24 = vector.broadcast %23 : vector<1x128xf32> to vector<32x128xf32>
      %25 = arith.addf %22, %24 : vector<32x128xf32>
      %cst = arith.constant 0.00999999977 : f32
      %26 = vector.broadcast %cst : f32 to vector<32x128xf32>
      %27 = arith.mulf %26, %25 : vector<32x128xf32>
      %28 = arith.maximumf %25, %27 : vector<32x128xf32>
      %c0_12 = arith.constant 0 : index
      %c0_13 = arith.constant 0 : index
      %29 = vector.load %arg5[%c0_12, %c0_13] : memref<32x128xf32, #tpu.memory_space<vmem>>, vector<32x128xf32>
      tpu.vector_store %arg5[%c0_12, %c0_13], %28 {strides = array<i32>} : memref<32x128xf32, #tpu.memory_space<vmem>>, vector<32x128xf32>,
    } else {
    }
    return
  }
  func.func @transform_0(%arg0: i32, %arg1: i32) -> (i32, i32) {
    %c3_i32 = arith.constant 3 : i32
    %0 = arith.subi %c3_i32, %arg1 : i32
    %1 = arith.muli %arg0, %0 : i32
    %2 = arith.addi %arg1, %1 : i32
    %c0_i32 = arith.constant 0 : i32
    %c0_i32_0 = arith.constant 0 : i32
    return %2, %c0_i32 : i32, i32
  }
  func.func @transform_1(%arg0: i32, %arg1: i32) -> (i32, i32) {
    %c0_i32 = arith.constant 0 : i32
    %c0_i32_0 = arith.constant 0 : i32
    %c0_i32_1 = arith.constant 0 : i32
    return %c0_i32, %c0_i32_0 : i32, i32
  }
  func.func @transform_2(%arg0: i32, %arg1: i32) -> (i32, i32) {
    %c0_i32 = arith.constant 0 : i32
    %c0_i32_0 = arith.constant 0 : i32
    %c0_i32_1 = arith.constant 0 : i32
    return %c0_i32, %c0_i32_0 : i32, i32
  }
  func.func @transform_3(%arg0: i32, %arg1: i32) -> (i32, i32) {
    %0 = arith.muli %arg0, %arg1 : i32
    %c0_i32 = arith.constant 0 : i32
    %c0_i32_0 = arith.constant 0 : i32
    return %0, %c0_i32 : i32, i32
  }
}

</mosaic_0001>

<llo_original>
// kernel: tile.13
$region0: #{tile.13}
  #allocation0 [shape = 's32[1]{0}', space=sflag, size = 0x4, scoped, tag = 'scoped memory for tile.13']
  %s0 = inlined_call_operand.vmem [shape: f32[32], index: 0, kind: input, shape index: {}]
  %s1 = inlined_call_operand.vmem [shape: f32[4,32], index: 1, kind: output, shape index: {}]
  // Predicated region
  $region2: #{tile.13} parent=0 // pred_check
    _
  $region3: #{tile.13} parent=0 // pred_check_branch
    %3 = sbr.rel (0) target = $region5
  $region4: #{tile.13} parent=0 // pred_region
    _
  $region5: #{tile.13} parent=0 // pred_fallthru
    _
  %v4 = vld [vmem:[%s0] ss:$0 sm:$0xff]
  %5 = vst [vmem:[%s1] sm:$0xf] %v4

// kernel: tile.18
$region0: #{tile.18}
  %s0 = inlined_call_operand.vmem [shape: f32[4,32], index: 0, kind: input, shape index: {}]
  %s1 = inlined_call_operand.vmem [shape: f32[1,128], index: 1, kind: output, shape index: {}]
  $region1: #{tile.18} parent=0
    #allocation0 [shape = 'u8[4096]{0}', space=vmem, size = 0x1000, scoped, tag = 'scoped mem for output reshape']
    #allocation1 [shape = 'u8[4096]{0}', space=vmem, size = 0x1000, scoped, tag = 'scoped mem for input reshape']
    %s3 = sshllo.u32 0, 4
    %v4 = vld [vmem:[%s0] sm:%s3]
    %5 = vst [vmem:[#allocation1] sm:%s3] %v4
    %v6 = vld [vmem:[#allocation1] sm:$0x1]
    %vm7 = vcmask 261120
    %8 = vst.msk [vmem:[#allocation0] sm:$0x1] %vm7, %v6
    %s9 = scalar_lea.vmem [#allocation1], 3
    %v10 = vld [vmem:[%s9] sm:$0x1]
    %11 = vrot.lane.b32.xlu0 %v10, 96
    %v12 = vpop.permute.xlu0 %11
    %vm13 = vcmask 1048320
    %14 = vst.msk [vmem:[#allocation0] sm:$0x1] %vm13, %v12
    %s15 = scalar_lea.vmem [#allocation1], 2
    %v16 = vld [vmem:[%s15] sm:$0x1]
    %17 = vrot.lane.b32.xlu0 %v16, 64
    %v18 = vpop.permute.xlu0 %17
    %vm19 = vcmask 785920
    %20 = vst.msk [vmem:[#allocation0] sm:$0x1] %vm19, %v18
    %s21 = scalar_lea.vmem [#allocation1], 1
    %v22 = vld [vmem:[%s21] sm:$0x1]
    %23 = vrot.lane.b32.xlu0 %v22, 32
    %v24 = vpop.permute.xlu0 %23
    %vm25 = vcmask 523520
    %26 = vst.msk [vmem:[#allocation0] sm:$0x1] %vm25, %v24
    %s28 = sshllo.u32 0, 1
    %v30 = vld [vmem:[#allocation0] sm:%s28]
    %s31 = sshllo.u32 0, 1
    %32 = vst [vmem:[%s1] sm:%s31] %v30

// kernel: dsfe_forward.1
$region0: #{dsfe_forward.1}
  #allocation0 [shape = 'u32[]', space=smem, size = 0x4, offset = 0x4, fixed_abs, tag = 'smem constant byte address 0x4 - core index']
  #allocation1 [shape = 'u32[144,128]{1,0:T(1,128)}', space=vmem, size = 0x12000, scoped, tag = 'internal scratch']
  #allocation2 [shape = 'f32[128,128]{1,0:T(8,128)}', space=vmem, size = 0x10000, scoped, tag = 'scratch operand']
  #allocation3 [shape = 'f32[1,128]{1,0:T(1,128)}', space=vmem, size = 0x200, scoped, tag = 'scratch operand']
  #allocation4 [shape = 'f32[1,128]{1,0:T(1,128)}', space=vmem, size = 0x200, scoped, tag = 'scratch operand']
  #allocation5 [shape = 'f32[1,128]{1,0:T(1,128)}', space=vmem, size = 0x200, scoped, tag = 'scratch operand']
  #allocation6 [shape = 'f32[1,128]{1,0:T(1,128)}', space=vmem, size = 0x200, scoped, tag = 'scratch operand']
  %s0 = inlined_call_operand.vmem [shape: f32[125,256], index: 0, kind: input, shape index: {}]
  %s1 = inlined_call_operand.vmem [shape: f32[256,128], index: 1, kind: input, shape index: {}]
  %s2 = inlined_call_operand.vmem [shape: f32[2,128], index: 2, kind: input, shape index: {}]
  %s3 = inlined_call_operand.vmem [shape: f32[125,128], index: 3, kind: output, shape index: {}]
  %s4 = sld [smem:[#allocation0]]
  $region61: #{dsfe_forward.1} parent=0
    _
  %s6 = ssub.s32 1, %s4
  %s7 = scalar_select 0, %s6, %s4
  loop: start=0, step=1, limit=10
  $region2: #{dsfe_forward.1} parent=0 // loop_pre_header
    _
  $region3: #{dsfe_forward.1} parent=0 // loop_header
    %s9 = sphi 0, %s13
    %p10 = scmp.ge.s32.totalorder %s9, 10
    %s16 = sphi 0, %s28
    %s17 = sphi 0, %s24
    %s18 = sphi 0, %s16
    %s19 = sphi 0, %s17
    %s20 = sphi 0, %s18
    %s21 = sphi 0, %s19
    %s37 = sphi 0, %s39
    %s40 = sphi 0, %s37
    %s41 = sphi 0, %s40
    %s57 = sphi 0, %s41
    %s61 = sphi 0, %s61
    %s63 = sphi 0, %s61
    %s64 = sphi 0, %s63
    %s78 = sphi 0, %s64
    %s82 = sphi 0, %s82
    %s84 = sphi 0, %s82
    %s85 = sphi 0, %s84
    %s99 = sphi 0, %s85
    %s107 = sphi 0, %s109
    %s110 = sphi 0, %s107
    %s111 = sphi 0, %s110
    %s127 = sphi 0, %s111
  $region4: #{dsfe_forward.1} parent=0 // loop_header_branch
    %12 = sbr.rel (%p10) target = $region8
  $region5: #{dsfe_forward.1} parent=0 // loop_body
    %s14 = ssub.s32 %s9, 1
    %s15 = ssub.s32 %s9, 2
    %s22 = sadd.s32 1, %s17
    %p23 = scmp.ge.s32.totalorder %s22, 4
    %s24 = scalar_select %p23, 0, %s22
    %s25 = sadd.s32 1, %s16
    %s26 = scalar_select %p23, %s25, %s16
    %p27 = scmp.ge.s32.totalorder %s26, 2
    %s28 = scalar_select %p27, 0, %s26
    %s29 = ssub.s32 3, %s17
    %s30 = smul.u32 %s16, %s29
    %s31 = sadd.s32 %s17, %s30
    %s32 = ssub.s32 3, %s24
    %s33 = smul.u32 %s28, %s32
    %s34 = sadd.s32 %s24, %s33
    %s35 = ssub.s32 %s31, %s34
    %p36 = scmp.eq.s32.totalorder %s35, 0
    %s38 = sadd.s32 %s37, 1
    %s39 = scalar_select %p36, %s37, %s38
    %p42 = pneg %p36
    %p43 = scmp.eq.s32.totalorder %s9, 7
    %p44 = por %p42, %p43
    %p45 = scmp.ne.s32.totalorder %s37, %s40
    %p46 = scmp.eq.s32.totalorder %s9, 0
    %p47 = por %p45, %p46
    %p48 = scmp.ne.s32.totalorder %s37, %s40
    %p49 = scmp.eq.s32.totalorder %s14, 7
    %p50 = por %p48, %p49
    %p51 = scmp.ne.s32.totalorder %s40, %s41
    %p52 = scmp.eq.s32.totalorder %s14, 0
    %p53 = por %p51, %p52
    %p54 = scmp.ne.s32.totalorder %s40, %s41
    %p55 = scmp.eq.s32.totalorder %s15, 7
    %p56 = por %p54, %p55
    %p58 = scmp.ne.s32.totalorder %s41, %s57
    %p59 = scmp.eq.s32.totalorder %s15, 0
    %p60 = por %p58, %p59
    %s62 = sadd.s32 %s61, 1
    %p65 = scmp.eq.s32.totalorder %s9, 7
    %p66 = scmp.ne.s32.totalorder %s61, %s63
    %p67 = scmp.eq.s32.totalorder %s9, 0
    %p68 = por %p66, %p67
    %p69 = scmp.ne.s32.totalorder %s61, %s63
    %p70 = scmp.eq.s32.totalorder %s14, 7
    %p71 = por %p69, %p70
    %p72 = scmp.ne.s32.totalorder %s63, %s64
    %p73 = scmp.eq.s32.totalorder %s14, 0
    %p74 = por %p72, %p73
    %p75 = scmp.ne.s32.totalorder %s63, %s64
    %p76 = scmp.eq.s32.totalorder %s15, 7
    %p77 = por %p75, %p76
    %p79 = scmp.ne.s32.totalorder %s64, %s78
    %p80 = scmp.eq.s32.totalorder %s15, 0
    %p81 = por %p79, %p80
    %s83 = sadd.s32 %s82, 1
    %p86 = scmp.eq.s32.totalorder %s9, 7
    %p87 = scmp.ne.s32.totalorder %s82, %s84
    %p88 = scmp.eq.s32.totalorder %s9, 0
    %p89 = por %p87, %p88
    %p90 = scmp.ne.s32.totalorder %s82, %s84
    %p91 = scmp.eq.s32.totalorder %s14, 7
    %p92 = por %p90, %p91
    %p93 = scmp.ne.s32.totalorder %s84, %s85
    %p94 = scmp.eq.s32.totalorder %s14, 0
    %p95 = por %p93, %p94
    %p96 = scmp.ne.s32.totalorder %s84, %s85
    %p97 = scmp.eq.s32.totalorder %s15, 7
    %p98 = por %p96, %p97
    %p100 = scmp.ne.s32.totalorder %s85, %s99
    %p101 = scmp.eq.s32.totalorder %s15, 0
    %p102 = por %p100, %p101
    %s103 = smul.u32 %s16, %s17
    %s104 = smul.u32 %s28, %s24
    %s105 = ssub.s32 %s103, %s104
    %p106 = scmp.eq.s32.totalorder %s105, 0
    %s108 = sadd.s32 %s107, 1
    %s109 = scalar_select %p106, %s107, %s108
    %p112 = pneg %p106
    %p113 = scmp.eq.s32.totalorder %s9, 7
    %p114 = por %p112, %p113
    %p115 = scmp.ne.s32.totalorder %s107, %s110
    %p116 = scmp.eq.s32.totalorder %s9, 0
    %p117 = por %p115, %p116
    %p118 = scmp.ne.s32.totalorder %s107, %s110
    %p119 = scmp.eq.s32.totalorder %s14, 7
    %p120 = por %p118, %p119
    %p121 = scmp.ne.s32.totalorder %s110, %s111
    %p122 = scmp.eq.s32.totalorder %s14, 0
    %p123 = por %p121, %p122
    %p124 = scmp.ne.s32.totalorder %s110, %s111
    %p125 = scmp.eq.s32.totalorder %s15, 7
    %p126 = por %p124, %p125
    %p128 = scmp.ne.s32.totalorder %s111, %s127
    %p129 = scmp.eq.s32.totalorder %s15, 0
    %p130 = por %p128, %p129
    %p131 = scmp.le.s32.totalorder 1, %s9
    %p132 = scmp.lt.s32.totalorder %s9, 9
    %p133 = pnand %p131, %p132
    %p134 = pneg %p133
    // Predicated region
    $region9: #{dsfe_forward.1} parent=5 // pred_check
      _
    $region10: #{dsfe_forward.1} parent=5 // pred_check_branch
      %136 = sbr.rel (%p133) target = $region12
    $region11: #{dsfe_forward.1} parent=5 // pred_region
      %s137 = ssub.s32 %s9, 1
      // Predicated region
      $region13: #{dsfe_forward.1} parent=11 // pred_check
        %p138 = pneg %p74
      $region14: #{dsfe_forward.1} parent=11 // pred_check_branch
        %140 = sbr.rel (%p138) target = $region16
      $region15: #{dsfe_forward.1} parent=11 // pred_region
        _
      $region16: #{dsfe_forward.1} parent=11 // pred_fallthru
        _
      // Predicated region
      $region17: #{dsfe_forward.1} parent=11 // pred_check
        %p141 = pneg %p95
      $region18: #{dsfe_forward.1} parent=11 // pred_check_branch
        %143 = sbr.rel (%p141) target = $region20
      $region19: #{dsfe_forward.1} parent=11 // pred_region
        _
      $region20: #{dsfe_forward.1} parent=11 // pred_fallthru
        _
    $region12: #{dsfe_forward.1} parent=5 // pred_fallthru
      _
    %p144 = scmp.lt.s32.totalorder %s9, 8
    // Predicated region
    $region21: #{dsfe_forward.1} parent=5 // pred_check
      %p145 = pneg %p144
    $region22: #{dsfe_forward.1} parent=5 // pred_check_branch
      %147 = sbr.rel (%p145) target = $region24
    $region23: #{dsfe_forward.1} parent=5 // pred_region
      // Predicated region
      $region25: #{dsfe_forward.1} parent=23 // pred_check
        %p148 = pneg %p47
      $region26: #{dsfe_forward.1} parent=23 // pred_check_branch
        %150 = sbr.rel (%p148) target = $region28
      $region27: #{dsfe_forward.1} parent=23 // pred_region
        %s151 = ssub.s32 3, %s17
        %s152 = smul.u32 %s16, %s151
        %s153 = sadd.s32 %s17, %s152
        %s154 = smul.u32 4, %s153
        %p155 = scmp.lt.s32.totalorder %s154, 15
        %s156 = scalar_select %p155, %s154, 15
        %s157 = smul.addr %s156, 2
        %s158 = smul.addr %s157, 8
        %s159 = scalar_lea.vmem %s0, %s158
        %s160 = ssub.s32 3, %s17
        %s161 = smul.u32 %s16, %s160
        %s162 = sadd.s32 %s17, %s161
        %s163 = smul.u32 4, %s162
      $region28: #{dsfe_forward.1} parent=23 // pred_fallthru
        _
    $region24: #{dsfe_forward.1} parent=5 // pred_fallthru
      _
    %p164 = scmp.le.s32.totalorder 1, %s9
    %p165 = scmp.lt.s32.totalorder %s9, 9
    %p166 = pnand %p164, %p165
    %p167 = pneg %p166
    // Predicated region
    $region29: #{dsfe_forward.1} parent=5 // pred_check
      _
    $region30: #{dsfe_forward.1} parent=5 // pred_check_branch
      %169 = sbr.rel (%p166) target = $region32
    $region31: #{dsfe_forward.1} parent=5 // pred_region
      %s170 = ssub.s32 %s9, 1
      %s171 = ssub.s32 3, %s19
      %s172 = smul.u32 %s18, %s171
      %s173 = sadd.s32 %s19, %s172
      %s174 = smul.u32 4, %s173
      %p175 = scmp.lt.s32.totalorder %s174, 15
      %s176 = scalar_select %p175, %s174, 15
      %s177 = smul.addr %s176, 2
      %s178 = smul.addr %s177, 8
      %s179 = scalar_lea.vmem %s0, %s178
      %p180 = pneg %p53
      %p181 = pneg %p50
      %p182 = pneg %p74
      %p183 = pneg %p71
      %p184 = pneg %p95
      %p185 = pneg %p92
      %p186 = pneg %p123
      %p187 = pneg %p120
      %s188 = smul.u32 %s18, %s19
      %s189 = smul.u32 4, %s188
      %p190 = scmp.lt.s32.totalorder %s189, 15
      %s191 = scalar_select %p190, %s189, 15
      %s192 = smul.addr %s191, 8
      %s193 = scalar_lea.vmem %s3, %s192
      %s194 = ssub.s32 3, %s19
      %s195 = smul.u32 %s18, %s194
      %s196 = sadd.s32 %s19, %s195
      %s197 = smul.u32 4, %s196
      %p198 = scmp.lt.s32.totalorder %s197, 15
      %s199 = scalar_select %p198, %s197, 15
      %s200 = smul.addr %s199, 2
      %s201 = smul.addr %s200, 8
      %s202 = scalar_lea.vmem %s0, %s201
      %s203 = ssub.s32 3, %s19
      %s204 = smul.u32 %s18, %s203
      %s205 = sadd.s32 %s19, %s204
      %s206 = smul.u32 4, %s205
      %s207 = smul.u32 %s18, %s19
      %s208 = smul.u32 4, %s207
      %p209 = scmp.lt.s32.totalorder %s208, 15
      %s210 = scalar_select %p209, %s208, 15
      %s211 = smul.addr %s210, 8
      %s212 = scalar_lea.vmem %s3, %s211
      %s213 = smul.u32 %s18, %s19
      %s214 = smul.u32 4, %s213
      %s215 = smul.u32 %s19, 32
      %p216 = scmp.eq.s32.totalorder %s18, 0
      %p217 = scmp.eq.s32.totalorder %s19, 0
      %p218 = pnand %p216, %p217
      %p219 = pneg %p218
      // Predicated region
      $region33: #{dsfe_forward.1} parent=31 // pred_check
        _
      $region34: #{dsfe_forward.1} parent=31 // pred_check_branch
        %221 = sbr.rel (%p218) target = $region36
      $region35: #{dsfe_forward.1} parent=31 // pred_region
        %222 = vst [vmem:[#allocation3] sm:$0x1] 0.0
        %223 = vst [vmem:[#allocation4] sm:$0x1] 0.0
      $region36: #{dsfe_forward.1} parent=31 // pred_fallthru
        _
      // Predicated region
      $region37: #{dsfe_forward.1} parent=31 // pred_check
        %p224 = pneg %p216
      $region38: #{dsfe_forward.1} parent=31 // pred_check_branch
        %226 = sbr.rel (%p224) target = $region40
      $region39: #{dsfe_forward.1} parent=31 // pred_region
        %v227 = vld [vmem:[%s202] sm:$0xff]
        %v228 = vld [vmem:[%s202 + $0x8] sm:$0xff]
        %v229 = vld [vmem:[%s202 + $0x10] sm:$0xff]
        %v230 = vld [vmem:[%s202 + $0x18] sm:$0xff]
        %v231 = vld [vmem:[%s202 + $0x20] sm:$0xff]
        %v232 = vld [vmem:[%s202 + $0x28] sm:$0xff]
        %v233 = vld [vmem:[%s202 + $0x30] sm:$0xff]
        %v234 = vld [vmem:[%s202 + $0x38] sm:$0xff]
        %v235 = vld [vmem:[%s1] sm:$0xff]
        %v236 = vld [vmem:[%s1 + $0x8] sm:$0xff]
        %v237 = vld [vmem:[%s1 + $0x10] sm:$0xff]
        %v238 = vld [vmem:[%s1 + $0x18] sm:$0xff]
        %v239 = vld [vmem:[%s1 + $0x20] sm:$0xff]
        %v240 = vld [vmem:[%s1 + $0x28] sm:$0xff]
        %v241 = vld [vmem:[%s1 + $0x30] sm:$0xff]
        %v242 = vld [vmem:[%s1 + $0x38] sm:$0xff]
        %v243 = vld [vmem:[%s1 + $0x40] sm:$0xff]
        %v244 = vld [vmem:[%s1 + $0x48] sm:$0xff]
        %v245 = vld [vmem:[%s1 + $0x50] sm:$0xff]
        %v246 = vld [vmem:[%s1 + $0x58] sm:$0xff]
        %v247 = vld [vmem:[%s1 + $0x60] sm:$0xff]
        %v248 = vld [vmem:[%s1 + $0x68] sm:$0xff]
        %v249 = vld [vmem:[%s1 + $0x70] sm:$0xff]
        %v250 = vld [vmem:[%s1 + $0x78] sm:$0xff]
        %v251 = vld [vmem:[%s1 + $0x80] sm:$0xff]
        %v252 = vld [vmem:[%s1 + $0x88] sm:$0xff]
        %v253 = vld [vmem:[%s1 + $0x90] sm:$0xff]
        %v254 = vld [vmem:[%s1 + $0x98] sm:$0xff]
        %v255 = vld [vmem:[%s1 + $0xa0] sm:$0xff]
        %v256 = vld [vmem:[%s1 + $0xa8] sm:$0xff]
        %v257 = vld [vmem:[%s1 + $0xb0] sm:$0xff]
        %v258 = vld [vmem:[%s1 + $0xb8] sm:$0xff]
        %v259 = vld [vmem:[%s1 + $0xc0] sm:$0xff]
        %v260 = vld [vmem:[%s1 + $0xc8] sm:$0xff]
        %v261 = vld [vmem:[%s1 + $0xd0] sm:$0xff]
        %v262 = vld [vmem:[%s1 + $0xd8] sm:$0xff]
        %v263 = vld [vmem:[%s1 + $0xe0] sm:$0xff]
        %v264 = vld [vmem:[%s1 + $0xe8] sm:$0xff]
        %v265 = vld [vmem:[%s1 + $0xf0] sm:$0xff]
        %v266 = vld [vmem:[%s1 + $0xf8] sm:$0xff]
        %267 = vmatprep.subr.mxu0 0.0
        %268 = vmatpush1.msra.mxu0 %v235
        %269 = vmatprep.subr.mxu0 0.0
        %270 = vmatpush1.msra.mxu0 %v236
        %271 = vmatprep.subr.mxu0 0.0
        %272 = vmatpush1.msra.mxu0 %v237
        %273 = vmatprep.subr.mxu0 0.0
        %274 = vmatpush1.msra.mxu0 %v238
        %275 = vmatprep.subr.mxu0 0.0
        %276 = vmatpush1.msra.mxu0 %v239
        %277 = vmatprep.subr.mxu0 0.0
        %278 = vmatpush1.msra.mxu0 %v240
        %279 = vmatprep.subr.mxu0 0.0
        %280 = vmatpush1.msra.mxu0 %v241
        %281 = vmatprep.subr.mxu0 0.0
        %282 = vmatpush1.msra.mxu0 %v242
        %283 = vmatprep.subr.mxu0 0.0
        %284 = vmatpush1.msra.mxu0 %v243
        %285 = vmatprep.subr.mxu0 0.0
        %286 = vmatpush1.msra.mxu0 %v244
        %287 = vmatprep.subr.mxu0 0.0
        %288 = vmatpush1.msra.mxu0 %v245
        %289 = vmatprep.subr.mxu0 0.0
        %290 = vmatpush1.msra.mxu0 %v246
        %291 = vmatprep.subr.mxu0 0.0
        %292 = vmatpush1.msra.mxu0 %v247
        %293 = vmatprep.subr.mxu0 0.0
        %294 = vmatpush1.msra.mxu0 %v248
        %295 = vmatprep.subr.mxu0 0.0
        %296 = vmatpush1.msra.mxu0 %v249
        %297 = vmatprep.subr.mxu0 0.0
        %298 = vmatpush1.msra.mxu0 %v250
        %299 = vmatprep.subr.mxu0 0.0
        %300 = vmatpush1.msra.mxu0 %v251
        %301 = vmatprep.subr.mxu0 0.0
        %302 = vmatpush1.msra.mxu0 %v252
        %303 = vmatprep.subr.mxu0 0.0
        %304 = vmatpush1.msra.mxu0 %v253
        %305 = vmatprep.subr.mxu0 0.0
        %306 = vmatpush1.msra.mxu0 %v254
        %307 = vmatprep.subr.mxu0 0.0
        %308 = vmatpush1.msra.mxu0 %v255
        %309 = vmatprep.subr.mxu0 0.0
        %310 = vmatpush1.msra.mxu0 %v256
        %311 = vmatprep.subr.mxu0 0.0
        %312 = vmatpush1.msra.mxu0 %v257
        %313 = vmatprep.subr.mxu0 0.0
        %314 = vmatpush1.msra.mxu0 %v258
        %315 = vmatprep.subr.mxu0 0.0
        %316 = vmatpush1.msra.mxu0 %v259
        %317 = vmatprep.subr.mxu0 0.0
        %318 = vmatpush1.msra.mxu0 %v260
        %319 = vmatprep.subr.mxu0 0.0
        %320 = vmatpush1.msra.mxu0 %v261
        %321 = vmatprep.subr.mxu0 0.0
        %322 = vmatpush1.msra.mxu0 %v262
        %323 = vmatprep.subr.mxu0 0.0
        %324 = vmatpush1.msra.mxu0 %v263
        %325 = vmatprep.subr.mxu0 0.0
        %326 = vmatpush1.msra.mxu0 %v264
        %327 = vmatprep.subr.mxu0 0.0
        %328 = vmatpush1.msra.mxu0 %v265
        %329 = vmatprep.subr.mxu0 0.0
        %330 = vmatpush1.msra.mxu0 %v266
        %331 = vmatprep.mubr.f32.mxu0 %v228
        %332 = vmatmul.mubr.f32.gmra.mrb[0].mxu0 %v227
        %v333 = vpop.f32.mrb[0].mxu0
        %v334 = vadd.f32 0.0, %v333
        %v335 = vpop.f32.mrb[0].mxu0
        %336 = vmatprep.mubr.f32.mxu0 %v230
        %337 = vmatmul.mubr.f32.gmra.mrb[0].mxu0 %v229
        %v338 = vpop.f32.mrb[0].mxu0
        %v339 = vadd.f32 0.0, %v338
        %v340 = vpop.f32.mrb[0].mxu0
        %341 = vmatprep.mubr.f32.mxu0 %v232
        %342 = vmatmul.mubr.f32.gmra.mrb[0].mxu0 %v231
        %v343 = vpop.f32.mrb[0].mxu0
        %v344 = vadd.f32 0.0, %v343
        %v345 = vpop.f32.mrb[0].mxu0
        %346 = vmatprep.mubr.f32.mxu0 %v234
        %347 = vmatmul.mubr.f32.gmra.mrb[0].mxu0 %v233
        %v348 = vpop.f32.mrb[0].mxu0
        %v349 = vadd.f32 0.0, %v348
        %v350 = vpop.f32.mrb[0].mxu0
        %351 = vdwg.mxu0
        %v352 = vlaneseq
        %v353 = vshrl.u32 %v352, 7
        %v354 = vadd.s32 %v353, 8
        %v355 = vadd.s32 %v353, 16
        %v356 = vadd.s32 %v353, 24
        %v357 = vstv %s215
        %v358 = vadd.s32 %v353, %v357
        %v359 = vadd.s32 %v354, %v357
        %v360 = vadd.s32 %v355, %v357
        %v361 = vadd.s32 %v356, %v357
        %vm362 = vcmp.lt.s32.totalorder %v358, 125
        %vm363 = vcmp.lt.s32.totalorder %v359, 125
        %vm364 = vcmp.lt.s32.totalorder %v360, 125
        %vm365 = vcmp.lt.s32.totalorder %v361, 125
        %v366 = vsel %vm362, 1, 0
        %v367 = vsel %vm363, 1, 0
        %v368 = vsel %vm364, 1, 0
        %v369 = vsel %vm365, 1, 0
        %vm370 = vcmp.eq.s32.totalorder %v366, 1
        %vm371 = vcmp.eq.s32.totalorder %v367, 1
        %vm372 = vcmp.eq.s32.totalorder %v368, 1
        %vm373 = vcmp.eq.s32.totalorder %v369, 1
        %v374 = vsel %vm370, %v334, 0.0
        %v375 = vsel %vm371, %v339, 0.0
        %v376 = vsel %vm372, %v344, 0.0
        %v377 = vsel %vm373, %v349, 0.0
        %s378 = scalar_lea.vmem [#allocation2], %s215
        %379 = vst [vmem:[%s378] sm:$0xff] %v374
        %380 = vst [vmem:[%s378 + $0x8] sm:$0xff] %v375
        %381 = vst [vmem:[%s378 + $0x10] sm:$0xff] %v376
        %382 = vst [vmem:[%s378 + $0x18] sm:$0xff] %v377
        %v383 = vld [vmem:[#allocation3] sm:$0x1]
        %vm384 = vcmask 261120
        %v386 = vsel %vm384, 1.0, 0
        %388 = vmatprep.subr.mxu0 0.0
        %389 = vmatpush1.msra.mxu0 %v374
        %390 = vmatprep.subr.mxu0 0.0
        %391 = vmatpush1.msra.mxu0 %v375
        %392 = vmatprep.subr.mxu0 0.0
        %393 = vmatpush1.msra.mxu0 %v376
        %394 = vmatprep.subr.mxu0 0.0
        %395 = vmatpush1.msra.mxu0 %v377
        %396 = vmatprep.subr.mxu0 0.0
        %397 = vmatpush1.msra.mxu0 0.0
        %398 = vmatprep.subr.mxu0 0.0
        %399 = vmatpush1.msra.mxu0 0.0
        %400 = vmatprep.subr.mxu0 0.0
        %401 = vmatpush1.msra.mxu0 0.0
        %402 = vmatprep.subr.mxu0 0.0
        %403 = vmatpush1.msra.mxu0 0.0
        %404 = vmatprep.subr.mxu0 0.0
        %405 = vmatpush1.msra.mxu0 0.0
        %406 = vmatprep.subr.mxu0 0.0
        %407 = vmatpush1.msra.mxu0 0.0
        %408 = vmatprep.subr.mxu0 0.0
        %409 = vmatpush1.msra.mxu0 0.0
        %410 = vmatprep.subr.mxu0 0.0
        %411 = vmatpush1.msra.mxu0 0.0
        %412 = vmatprep.subr.mxu0 0.0
        %413 = vmatpush1.msra.mxu0 0.0
        %414 = vmatprep.subr.mxu0 0.0
        %415 = vmatpush1.msra.mxu0 0.0
        %416 = vmatprep.subr.mxu0 0.0
        %417 = vmatpush1.msra.mxu0 0.0
        %418 = vmatprep.subr.mxu0 0.0
        %419 = vmatpush1.msra.mxu0 0.0
        %420 = vmatprep.subr.mxu0 0.0
        %421 = vmatpush1.msra.mxu0 0.0
        %422 = vmatprep.subr.mxu0 0.0
        %423 = vmatpush1.msra.mxu0 0.0
        %424 = vmatprep.subr.mxu0 0.0
        %425 = vmatpush1.msra.mxu0 0.0
        %426 = vmatprep.subr.mxu0 0.0
        %427 = vmatpush1.msra.mxu0 0.0
        %428 = vmatprep.subr.mxu0 0.0
        %429 = vmatpush1.msra.mxu0 0.0
        %430 = vmatprep.subr.mxu0 0.0
        %431 = vmatpush1.msra.mxu0 0.0
        %432 = vmatprep.subr.mxu0 0.0
        %433 = vmatpush1.msra.mxu0 0.0
        %434 = vmatprep.subr.mxu0 0.0
        %435 = vmatpush1.msra.mxu0 0.0
        %436 = vmatprep.subr.mxu0 0.0
        %437 = vmatpush1.msra.mxu0 0.0
        %438 = vmatprep.subr.mxu0 0.0
        %439 = vmatpush1.msra.mxu0 0.0
        %440 = vmatprep.subr.mxu0 0.0
        %441 = vmatpush1.msra.mxu0 0.0
        %442 = vmatprep.subr.mxu0 0.0
        %443 = vmatpush1.msra.mxu0 0.0
        %444 = vmatprep.subr.mxu0 0.0
        %445 = vmatpush1.msra.mxu0 0.0
        %446 = vmatprep.subr.mxu0 0.0
        %447 = vmatpush1.msra.mxu0 0.0
        %448 = vmatprep.subr.mxu0 0.0
        %449 = vmatpush1.msra.mxu0 0.0
        %450 = vmatprep.subr.mxu0 0.0
        %451 = vmatpush1.msra.mxu0 0.0
        %452 = vmatprep.mubr.f32.mxu0 0.0
        %453 = vmatmul.mubr.f32.gmra.mrb[0].mxu0 %v386
        %v454 = vpop.f32.mrb[0].mxu0
        %v455 = vadd.f32 0.0, %v454
        %v456 = vpop.f32.mrb[0].mxu0
        %457 = vdwg.mxu0
        %v458 = vadd.f32 %v383, %v455
        %459 = vst [vmem:[#allocation3] sm:$0x1] %v458
        %v460 = vld [vmem:[#allocation4] sm:$0x1]
        %v461 = vmul.f32 %v374, %v374
        %v462 = vmul.f32 %v375, %v375
        %v463 = vmul.f32 %v376, %v376
        %v464 = vmul.f32 %v377, %v377
        %465 = vmatprep.subr.mxu0 0.0
        %466 = vmatpush1.msra.mxu0 %v461
        %467 = vmatprep.subr.mxu0 0.0
        %468 = vmatpush1.msra.mxu0 %v462
        %469 = vmatprep.subr.mxu0 0.0
        %470 = vmatpush1.msra.mxu0 %v463
        %471 = vmatprep.subr.mxu0 0.0
        %472 = vmatpush1.msra.mxu0 %v464
        %473 = vmatprep.subr.mxu0 0.0
        %474 = vmatpush1.msra.mxu0 0.0
        %475 = vmatprep.subr.mxu0 0.0
        %476 = vmatpush1.msra.mxu0 0.0
        %477 = vmatprep.subr.mxu0 0.0
        %478 = vmatpush1.msra.mxu0 0.0
        %479 = vmatprep.subr.mxu0 0.0
        %480 = vmatpush1.msra.mxu0 0.0
        %481 = vmatprep.subr.mxu0 0.0
        %482 = vmatpush1.msra.mxu0 0.0
        %483 = vmatprep.subr.mxu0 0.0
        %484 = vmatpush1.msra.mxu0 0.0
        %485 = vmatprep.subr.mxu0 0.0
        %486 = vmatpush1.msra.mxu0 0.0
        %487 = vmatprep.subr.mxu0 0.0
        %488 = vmatpush1.msra.mxu0 0.0
        %489 = vmatprep.subr.mxu0 0.0
        %490 = vmatpush1.msra.mxu0 0.0
        %491 = vmatprep.subr.mxu0 0.0
        %492 = vmatpush1.msra.mxu0 0.0
        %493 = vmatprep.subr.mxu0 0.0
        %494 = vmatpush1.msra.mxu0 0.0
        %495 = vmatprep.subr.mxu0 0.0
        %496 = vmatpush1.msra.mxu0 0.0
        %497 = vmatprep.subr.mxu0 0.0
        %498 = vmatpush1.msra.mxu0 0.0
        %499 = vmatprep.subr.mxu0 0.0
        %500 = vmatpush1.msra.mxu0 0.0
        %501 = vmatprep.subr.mxu0 0.0
        %502 = vmatpush1.msra.mxu0 0.0
        %503 = vmatprep.subr.mxu0 0.0
        %504 = vmatpush1.msra.mxu0 0.0
        %505 = vmatprep.subr.mxu0 0.0
        %506 = vmatpush1.msra.mxu0 0.0
        %507 = vmatprep.subr.mxu0 0.0
        %508 = vmatpush1.msra.mxu0 0.0
        %509 = vmatprep.subr.mxu0 0.0
        %510 = vmatpush1.msra.mxu0 0.0
        %511 = vmatprep.subr.mxu0 0.0
        %512 = vmatpush1.msra.mxu0 0.0
        %513 = vmatprep.subr.mxu0 0.0
        %514 = vmatpush1.msra.mxu0 0.0
        %515 = vmatprep.subr.mxu0 0.0
        %516 = vmatpush1.msra.mxu0 0.0
        %517 = vmatprep.subr.mxu0 0.0
        %518 = vmatpush1.msra.mxu0 0.0
        %519 = vmatprep.subr.mxu0 0.0
        %520 = vmatpush1.msra.mxu0 0.0
        %521 = vmatprep.subr.mxu0 0.0
        %522 = vmatpush1.msra.mxu0 0.0
        %523 = vmatprep.subr.mxu0 0.0
        %524 = vmatpush1.msra.mxu0 0.0
        %525 = vmatprep.subr.mxu0 0.0
        %526 = vmatpush1.msra.mxu0 0.0
        %527 = vmatprep.subr.mxu0 0.0
        %528 = vmatpush1.msra.mxu0 0.0
        %529 = vmatprep.mubr.f32.mxu0 0.0
        %530 = vmatmul.mubr.f32.gmra.mrb[0].mxu0 %v386
        %v531 = vpop.f32.mrb[0].mxu0
        %v532 = vadd.f32 0.0, %v531
        %v533 = vpop.f32.mrb[0].mxu0
        %534 = vdwg.mxu0
        %v535 = vadd.f32 %v460, %v532
        %536 = vst [vmem:[#allocation4] sm:$0x1] %v535
      $region40: #{dsfe_forward.1} parent=31 // pred_fallthru
        _
      %p537 = scmp.eq.s32.totalorder %s18, 1
      %p538 = pnand %p537, %p217
      %p539 = pneg %p538
      // Predicated region
      $region41: #{dsfe_forward.1} parent=31 // pred_check
        _
      $region42: #{dsfe_forward.1} parent=31 // pred_check_branch
        %541 = sbr.rel (%p538) target = $region44
      $region43: #{dsfe_forward.1} parent=31 // pred_region
        %v542 = vlaneseq
        %v543 = vshrl.u32 %v542, 7
        %v544 = vadd.s32 %v543, 8
        %v545 = vadd.s32 %v543, 16
        %v546 = vadd.s32 %v543, 24
        %v547 = vadd.s32 %v543, 32
        %v548 = vadd.s32 %v543, 40
        %v549 = vadd.s32 %v543, 48
        %v550 = vadd.s32 %v543, 56
        %v551 = vadd.s32 %v543, 64
        %v552 = vadd.s32 %v543, 72
        %v553 = vadd.s32 %v543, 80
        %v554 = vadd.s32 %v543, 88
        %v555 = vadd.s32 %v543, 96
        %v556 = vadd.s32 %v543, 104
        %v557 = vadd.s32 %v543, 112
        %v558 = vadd.s32 %v543, 120
        %vm559 = vcmp.lt.s32.totalorder %v543, 0
        %v560 = vsub.s32 0, %v543
        %v561 = vsel %vm559, %v560, %v543
        %v562 = vshrl.u32 %v561, 5
        %v563 = vand.u32 %v561, 31
        %v564 = vsub.s32 0, %v563
        %v565 = vsel %vm559, %v564, %v563
        %vm566 = vcmp.lt.s32.totalorder %v544, 0
        %v567 = vsub.s32 0, %v544
        %v568 = vsel %vm566, %v567, %v544
        %v569 = vshrl.u32 %v568, 5
        %v570 = vand.u32 %v568, 31
        %v571 = vsub.s32 0, %v570
        %v572 = vsel %vm566, %v571, %v570
        %vm573 = vcmp.lt.s32.totalorder %v545, 0
        %v574 = vsub.s32 0, %v545
        %v575 = vsel %vm573, %v574, %v545
        %v576 = vshrl.u32 %v575, 5
        %v577 = vand.u32 %v575, 31
        %v578 = vsub.s32 0, %v577
        %v579 = vsel %vm573, %v578, %v577
        %vm580 = vcmp.lt.s32.totalorder %v546, 0
        %v581 = vsub.s32 0, %v546
        %v582 = vsel %vm580, %v581, %v546
        %v583 = vshrl.u32 %v582, 5
        %v584 = vand.u32 %v582, 31
        %v585 = vsub.s32 0, %v584
        %v586 = vsel %vm580, %v585, %v584
        %vm587 = vcmp.lt.s32.totalorder %v547, 0
        %v588 = vsub.s32 0, %v547
        %v589 = vsel %vm587, %v588, %v547
        %v590 = vshrl.u32 %v589, 5
        %v591 = vand.u32 %v589, 31
        %v592 = vsub.s32 0, %v591
        %v593 = vsel %vm587, %v592, %v591
        %vm594 = vcmp.lt.s32.totalorder %v548, 0
        %v595 = vsub.s32 0, %v548
        %v596 = vsel %vm594, %v595, %v548
        %v597 = vshrl.u32 %v596, 5
        %v598 = vand.u32 %v596, 31
        %v599 = vsub.s32 0, %v598
        %v600 = vsel %vm594, %v599, %v598
        %vm601 = vcmp.lt.s32.totalorder %v549, 0
        %v602 = vsub.s32 0, %v549
        %v603 = vsel %vm601, %v602, %v549
        %v604 = vshrl.u32 %v603, 5
        %v605 = vand.u32 %v603, 31
        %v606 = vsub.s32 0, %v605
        %v607 = vsel %vm601, %v606, %v605
        %vm608 = vcmp.lt.s32.totalorder %v550, 0
        %v609 = vsub.s32 0, %v550
        %v610 = vsel %vm608, %v609, %v550
        %v611 = vshrl.u32 %v610, 5
        %v612 = vand.u32 %v610, 31
        %v613 = vsub.s32 0, %v612
        %v614 = vsel %vm608, %v613, %v612
        %vm615 = vcmp.lt.s32.totalorder %v551, 0
        %v616 = vsub.s32 0, %v551
        %v617 = vsel %vm615, %v616, %v551
        %v618 = vshrl.u32 %v617, 5
        %v619 = vand.u32 %v617, 31
        %v620 = vsub.s32 0, %v619
        %v621 = vsel %vm615, %v620, %v619
        %vm622 = vcmp.lt.s32.totalorder %v552, 0
        %v623 = vsub.s32 0, %v552
        %v624 = vsel %vm622, %v623, %v552
        %v625 = vshrl.u32 %v624, 5
        %v626 = vand.u32 %v624, 31
        %v627 = vsub.s32 0, %v626
        %v628 = vsel %vm622, %v627, %v626
        %vm629 = vcmp.lt.s32.totalorder %v553, 0
        %v630 = vsub.s32 0, %v553
        %v631 = vsel %vm629, %v630, %v553
        %v632 = vshrl.u32 %v631, 5
        %v633 = vand.u32 %v631, 31
        %v634 = vsub.s32 0, %v633
        %v635 = vsel %vm629, %v634, %v633
        %vm636 = vcmp.lt.s32.totalorder %v554, 0
        %v637 = vsub.s32 0, %v554
        %v638 = vsel %vm636, %v637, %v554
        %v639 = vshrl.u32 %v638, 5
        %v640 = vand.u32 %v638, 31
        %v641 = vsub.s32 0, %v640
        %v642 = vsel %vm636, %v641, %v640
        %vm643 = vcmp.lt.s32.totalorder %v555, 0
        %v644 = vsub.s32 0, %v555
        %v645 = vsel %vm643, %v644, %v555
        %v646 = vshrl.u32 %v645, 5
        %v647 = vand.u32 %v645, 31
        %v648 = vsub.s32 0, %v647
        %v649 = vsel %vm643, %v648, %v647
        %vm650 = vcmp.lt.s32.totalorder %v556, 0
        %v651 = vsub.s32 0, %v556
        %v652 = vsel %vm650, %v651, %v556
        %v653 = vshrl.u32 %v652, 5
        %v654 = vand.u32 %v652, 31
        %v655 = vsub.s32 0, %v654
        %v656 = vsel %vm650, %v655, %v654
        %vm657 = vcmp.lt.s32.totalorder %v557, 0
        %v658 = vsub.s32 0, %v557
        %v659 = vsel %vm657, %v658, %v557
        %v660 = vshrl.u32 %v659, 5
        %v661 = vand.u32 %v659, 31
        %v662 = vsub.s32 0, %v661
        %v663 = vsel %vm657, %v662, %v661
        %vm664 = vcmp.lt.s32.totalorder %v558, 0
        %v665 = vsub.s32 0, %v558
        %v666 = vsel %vm664, %v665, %v558
        %v667 = vshrl.u32 %v666, 5
        %v668 = vand.u32 %v666, 31
        %v669 = vsub.s32 0, %v668
        %v670 = vsel %vm664, %v669, %v668
        %vm671 = vcmp.ne.s32.totalorder %v565, 0
        %vm672 = vcmp.ne.s32.totalorder %v572, 0
        %vm673 = vcmp.ne.s32.totalorder %v579, 0
        %vm674 = vcmp.ne.s32.totalorder %v586, 0
        %vm675 = vcmp.ne.s32.totalorder %v593, 0
        %vm676 = vcmp.ne.s32.totalorder %v600, 0
        %vm677 = vcmp.ne.s32.totalorder %v607, 0
        %vm678 = vcmp.ne.s32.totalorder %v614, 0
        %vm679 = vcmp.ne.s32.totalorder %v621, 0
        %vm680 = vcmp.ne.s32.totalorder %v628, 0
        %vm681 = vcmp.ne.s32.totalorder %v635, 0
        %vm682 = vcmp.ne.s32.totalorder %v642, 0
        %vm683 = vcmp.ne.s32.totalorder %v649, 0
        %vm684 = vcmp.ne.s32.totalorder %v656, 0
        %vm685 = vcmp.ne.s32.totalorder %v663, 0
        %vm686 = vcmp.ne.s32.totalorder %v670, 0
        %vm687 = vcmp.lt.s32.totalorder %v565, 0
        %vm688 = vcmp.lt.s32.totalorder %v572, 0
        %vm689 = vcmp.lt.s32.totalorder %v579, 0
        %vm690 = vcmp.lt.s32.totalorder %v586, 0
        %vm691 = vcmp.lt.s32.totalorder %v593, 0
        %vm692 = vcmp.lt.s32.totalorder %v600, 0
        %vm693 = vcmp.lt.s32.totalorder %v607, 0
        %vm694 = vcmp.lt.s32.totalorder %v614, 0
        %vm695 = vcmp.lt.s32.totalorder %v621, 0
        %vm696 = vcmp.lt.s32.totalorder %v628, 0
        %vm697 = vcmp.lt.s32.totalorder %v635, 0
        %vm698 = vcmp.lt.s32.totalorder %v642, 0
        %vm699 = vcmp.lt.s32.totalorder %v649, 0
        %vm700 = vcmp.lt.s32.totalorder %v656, 0
        %vm701 = vcmp.lt.s32.totalorder %v663, 0
        %vm702 = vcmp.lt.s32.totalorder %v670, 0
        %vm703 = vmand %vm687, %vm671
        %vm704 = vmand %vm688, %vm672
        %vm705 = vmand %vm689, %vm673
        %vm706 = vmand %vm690, %vm674
        %vm707 = vmand %vm691, %vm675
        %vm708 = vmand %vm692, %vm676
        %vm709 = vmand %vm693, %vm677
        %vm710 = vmand %vm694, %vm678
        %vm711 = vmand %vm695, %vm679
        %vm712 = vmand %vm696, %vm680
        %vm713 = vmand %vm697, %vm681
        %vm714 = vmand %vm698, %vm682
        %vm715 = vmand %vm699, %vm683
        %vm716 = vmand %vm700, %vm684
        %vm717 = vmand %vm701, %vm685
        %vm718 = vmand %vm702, %vm686
        %v719 = vadd.s32 %v565, 32
        %v720 = vadd.s32 %v572, 32
        %v721 = vadd.s32 %v579, 32
        %v722 = vadd.s32 %v586, 32
        %v723 = vadd.s32 %v593, 32
        %v724 = vadd.s32 %v600, 32
        %v725 = vadd.s32 %v607, 32
        %v726 = vadd.s32 %v614, 32
        %v727 = vadd.s32 %v621, 32
        %v728 = vadd.s32 %v628, 32
        %v729 = vadd.s32 %v635, 32
        %v730 = vadd.s32 %v642, 32
        %v731 = vadd.s32 %v649, 32
        %v732 = vadd.s32 %v656, 32
        %v733 = vadd.s32 %v663, 32
        %v734 = vadd.s32 %v670, 32
        %v735 = vsel %vm703, %v719, %v565
        %v736 = vsel %vm704, %v720, %v572
        %v737 = vsel %vm705, %v721, %v579
        %v738 = vsel %vm706, %v722, %v586
        %v739 = vsel %vm707, %v723, %v593
        %v740 = vsel %vm708, %v724, %v600
        %v741 = vsel %vm709, %v725, %v607
        %v742 = vsel %vm710, %v726, %v614
        %v743 = vsel %vm711, %v727, %v621
        %v744 = vsel %vm712, %v728, %v628
        %v745 = vsel %vm713, %v729, %v635
        %v746 = vsel %vm714, %v730, %v642
        %v747 = vsel %vm715, %v731, %v649
        %v748 = vsel %vm716, %v732, %v656
        %v749 = vsel %vm717, %v733, %v663
        %v750 = vsel %vm718, %v734, %v670
        %v751 = vlaneseq
        %v752 = vand.u32 %v751, 127
        %vm753 = vcmp.lt.s32.totalorder %v752, 0
        %v754 = vsub.s32 0, %v752
        %v755 = vsel %vm753, %v754, %v752
        %v756 = vshrl.u32 %v755, 5
        %v757 = vand.u32 %v755, 31
        %v758 = vsub.s32 0, %v757
        %v759 = vsel %vm753, %v758, %v757
        %vm760 = vcmp.ne.s32.totalorder %v759, 0
        %vm761 = vcmp.lt.s32.totalorder %v759, 0
        %vm762 = vmand %vm761, %vm760
        %v763 = vadd.s32 %v759, 32
        %v764 = vsel %vm762, %v763, %v759
        %vm765 = vcmp.eq.s32.totalorder %v735, %v764
        %vm766 = vcmp.eq.s32.totalorder %v736, %v764
        %vm767 = vcmp.eq.s32.totalorder %v737, %v764
        %vm768 = vcmp.eq.s32.totalorder %v738, %v764
        %vm769 = vcmp.eq.s32.totalorder %v739, %v764
        %vm770 = vcmp.eq.s32.totalorder %v740, %v764
        %vm771 = vcmp.eq.s32.totalorder %v741, %v764
        %vm772 = vcmp.eq.s32.totalorder %v742, %v764
        %vm773 = vcmp.eq.s32.totalorder %v743, %v764
        %vm774 = vcmp.eq.s32.totalorder %v744, %v764
        %vm775 = vcmp.eq.s32.totalorder %v745, %v764
        %vm776 = vcmp.eq.s32.totalorder %v746, %v764
        %vm777 = vcmp.eq.s32.totalorder %v747, %v764
        %vm778 = vcmp.eq.s32.totalorder %v748, %v764
        %vm779 = vcmp.eq.s32.totalorder %v749, %v764
        %vm780 = vcmp.eq.s32.totalorder %v750, %v764
        %v781 = vsel %vm765, 1, 0
        %v782 = vsel %vm766, 1, 0
        %v783 = vsel %vm767, 1, 0
        %v784 = vsel %vm768, 1, 0
        %v785 = vsel %vm769, 1, 0
        %v786 = vsel %vm770, 1, 0
        %v787 = vsel %vm771, 1, 0
        %v788 = vsel %vm772, 1, 0
        %v789 = vsel %vm773, 1, 0
        %v790 = vsel %vm774, 1, 0
        %v791 = vsel %vm775, 1, 0
        %v792 = vsel %vm776, 1, 0
        %v793 = vsel %vm777, 1, 0
        %v794 = vsel %vm778, 1, 0
        %v795 = vsel %vm779, 1, 0
        %v796 = vsel %vm780, 1, 0
        %v797 = vcvt.s32.f32 %v781
        %v798 = vcvt.s32.f32 %v782
        %v799 = vcvt.s32.f32 %v783
        %v800 = vcvt.s32.f32 %v784
        %v801 = vcvt.s32.f32 %v785
        %v802 = vcvt.s32.f32 %v786
        %v803 = vcvt.s32.f32 %v787
        %v804 = vcvt.s32.f32 %v788
        %v805 = vcvt.s32.f32 %v789
        %v806 = vcvt.s32.f32 %v790
        %v807 = vcvt.s32.f32 %v791
        %v808 = vcvt.s32.f32 %v792
        %v809 = vcvt.s32.f32 %v793
        %v810 = vcvt.s32.f32 %v794
        %v811 = vcvt.s32.f32 %v795
        %v812 = vcvt.s32.f32 %v796
        %v813 = vld [vmem:[#allocation3] sm:$0x1]
        %814 = vmatprep.subr.mxu0 0.0
        %815 = vmatpush1.msra.mxu0 %v797
        %816 = vmatprep.subr.mxu0 0.0
        %817 = vmatpush1.msra.mxu0 %v798
        %818 = vmatprep.subr.mxu0 0.0
        %819 = vmatpush1.msra.mxu0 %v799
        %820 = vmatprep.subr.mxu0 0.0
        %821 = vmatpush1.msra.mxu0 %v800
        %822 = vmatprep.subr.mxu0 0.0
        %823 = vmatpush1.msra.mxu0 %v801
        %824 = vmatprep.subr.mxu0 0.0
        %825 = vmatpush1.msra.mxu0 %v802
        %826 = vmatprep.subr.mxu0 0.0
        %827 = vmatpush1.msra.mxu0 %v803
        %828 = vmatprep.subr.mxu0 0.0
        %829 = vmatpush1.msra.mxu0 %v804
        %830 = vmatprep.subr.mxu0 0.0
        %831 = vmatpush1.msra.mxu0 %v805
        %832 = vmatprep.subr.mxu0 0.0
        %833 = vmatpush1.msra.mxu0 %v806
        %834 = vmatprep.subr.mxu0 0.0
        %835 = vmatpush1.msra.mxu0 %v807
        %836 = vmatprep.subr.mxu0 0.0
        %837 = vmatpush1.msra.mxu0 %v808
        %838 = vmatprep.subr.mxu0 0.0
        %839 = vmatpush1.msra.mxu0 %v809
        %840 = vmatprep.subr.mxu0 0.0
        %841 = vmatpush1.msra.mxu0 %v810
        %842 = vmatprep.subr.mxu0 0.0
        %843 = vmatpush1.msra.mxu0 %v811
        %844 = vmatprep.subr.mxu0 0.0
        %845 = vmatpush1.msra.mxu0 %v812
        %846 = vmatprep.subr.mxu0 0.0
        %847 = vmatpush1.msra.mxu0 0.0
        %848 = vmatprep.subr.mxu0 0.0
        %849 = vmatpush1.msra.mxu0 0.0
        %850 = vmatprep.subr.mxu0 0.0
        %851 = vmatpush1.msra.mxu0 0.0
        %852 = vmatprep.subr.mxu0 0.0
        %853 = vmatpush1.msra.mxu0 0.0
        %854 = vmatprep.subr.mxu0 0.0
        %855 = vmatpush1.msra.mxu0 0.0
        %856 = vmatprep.subr.mxu0 0.0
        %857 = vmatpush1.msra.mxu0 0.0
        %858 = vmatprep.subr.mxu0 0.0
        %859 = vmatpush1.msra.mxu0 0.0
        %860 = vmatprep.subr.mxu0 0.0
        %861 = vmatpush1.msra.mxu0 0.0
        %862 = vmatprep.subr.mxu0 0.0
        %863 = vmatpush1.msra.mxu0 0.0
        %864 = vmatprep.subr.mxu0 0.0
        %865 = vmatpush1.msra.mxu0 0.0
        %866 = vmatprep.subr.mxu0 0.0
        %867 = vmatpush1.msra.mxu0 0.0
        %868 = vmatprep.subr.mxu0 0.0
        %869 = vmatpush1.msra.mxu0 0.0
        %870 = vmatprep.subr.mxu0 0.0
        %871 = vmatpush1.msra.mxu0 0.0
        %872 = vmatprep.subr.mxu0 0.0
        %873 = vmatpush1.msra.mxu0 0.0
        %874 = vmatprep.subr.mxu0 0.0
        %875 = vmatpush1.msra.mxu0 0.0
        %876 = vmatprep.subr.mxu0 0.0
        %877 = vmatpush1.msra.mxu0 0.0
        %878 = vmatprep.mubr.f32.mxu0 0.0
        %879 = vmatmul.mubr.f32.gmra.mrb[0].mxu0 %v813
        %v880 = vpop.f32.mrb[0].mxu0
        %v881 = vadd.f32 0.0, %v880
        %v882 = vpop.f32.mrb[0].mxu0
        %883 = vdwg.mxu0
        %v884 = vld [vmem:[#allocation4] sm:$0x1]
        %885 = vmatprep.subr.mxu0 0.0
        %886 = vmatpush1.msra.mxu0 %v797
        %887 = vmatprep.subr.mxu0 0.0
        %888 = vmatpush1.msra.mxu0 %v798
        %889 = vmatprep.subr.mxu0 0.0
        %890 = vmatpush1.msra.mxu0 %v799
        %891 = vmatprep.subr.mxu0 0.0
        %892 = vmatpush1.msra.mxu0 %v800
        %893 = vmatprep.subr.mxu0 0.0
        %894 = vmatpush1.msra.mxu0 %v801
        %895 = vmatprep.subr.mxu0 0.0
        %896 = vmatpush1.msra.mxu0 %v802
        %897 = vmatprep.subr.mxu0 0.0
        %898 = vmatpush1.msra.mxu0 %v803
        %899 = vmatprep.subr.mxu0 0.0
        %900 = vmatpush1.msra.mxu0 %v804
        %901 = vmatprep.subr.mxu0 0.0
        %902 = vmatpush1.msra.mxu0 %v805
        %903 = vmatprep.subr.mxu0 0.0
        %904 = vmatpush1.msra.mxu0 %v806
        %905 = vmatprep.subr.mxu0 0.0
        %906 = vmatpush1.msra.mxu0 %v807
        %907 = vmatprep.subr.mxu0 0.0
        %908 = vmatpush1.msra.mxu0 %v808
        %909 = vmatprep.subr.mxu0 0.0
        %910 = vmatpush1.msra.mxu0 %v809
        %911 = vmatprep.subr.mxu0 0.0
        %912 = vmatpush1.msra.mxu0 %v810
        %913 = vmatprep.subr.mxu0 0.0
        %914 = vmatpush1.msra.mxu0 %v811
        %915 = vmatprep.subr.mxu0 0.0
        %916 = vmatpush1.msra.mxu0 %v812
        %917 = vmatprep.subr.mxu0 0.0
        %918 = vmatpush1.msra.mxu0 0.0
        %919 = vmatprep.subr.mxu0 0.0
        %920 = vmatpush1.msra.mxu0 0.0
        %921 = vmatprep.subr.mxu0 0.0
        %922 = vmatpush1.msra.mxu0 0.0
        %923 = vmatprep.subr.mxu0 0.0
        %924 = vmatpush1.msra.mxu0 0.0
        %925 = vmatprep.subr.mxu0 0.0
        %926 = vmatpush1.msra.mxu0 0.0
        %927 = vmatprep.subr.mxu0 0.0
        %928 = vmatpush1.msra.mxu0 0.0
        %929 = vmatprep.subr.mxu0 0.0
        %930 = vmatpush1.msra.mxu0 0.0
        %931 = vmatprep.subr.mxu0 0.0
        %932 = vmatpush1.msra.mxu0 0.0
        %933 = vmatprep.subr.mxu0 0.0
        %934 = vmatpush1.msra.mxu0 0.0
        %935 = vmatprep.subr.mxu0 0.0
        %936 = vmatpush1.msra.mxu0 0.0
        %937 = vmatprep.subr.mxu0 0.0
        %938 = vmatpush1.msra.mxu0 0.0
        %939 = vmatprep.subr.mxu0 0.0
        %940 = vmatpush1.msra.mxu0 0.0
        %941 = vmatprep.subr.mxu0 0.0
        %942 = vmatpush1.msra.mxu0 0.0
        %943 = vmatprep.subr.mxu0 0.0
        %944 = vmatpush1.msra.mxu0 0.0
        %945 = vmatprep.subr.mxu0 0.0
        %946 = vmatpush1.msra.mxu0 0.0
        %947 = vmatprep.subr.mxu0 0.0
        %948 = vmatpush1.msra.mxu0 0.0
        %949 = vmatprep.mubr.f32.mxu0 0.0
        %950 = vmatmul.mubr.f32.gmra.mrb[0].mxu0 %v884
        %v951 = vpop.f32.mrb[0].mxu0
        %v952 = vadd.f32 0.0, %v951
        %v953 = vpop.f32.mrb[0].mxu0
        %954 = vdwg.mxu0
        %v955 = vmul.f32 %v881, 0.002
        %v956 = vmul.f32 %v952, 0.002
        %v957 = vmul.f32 %v955, %v955
        %v958 = vsub.f32 %v956, %v957
        %v959 = vmax.f32 %v958, 0.0
        %v960 = vadd.f32 %v959, 1e-05
        %v961 = vrsqrt.pop %v960
        %v962 = vld [vmem:[%s2] sm:$0x1]
        %v963 = vmul.f32 %v962, %v961
        %964 = vst [vmem:[#allocation5] sm:$0x1] %v963
        %v965 = vld [vmem:[%s2 + $0x1] sm:$0x1]
        %v966 = vmul.f32 %v955, %v963
        %v967 = vsub.f32 %v965, %v966
        %968 = vst [vmem:[#allocation6] sm:$0x1] %v967
      $region44: #{dsfe_forward.1} parent=31 // pred_fallthru
        _
      // Predicated region
      $region45: #{dsfe_forward.1} parent=31 // pred_check
        %p969 = pneg %p537
      $region46: #{dsfe_forward.1} parent=31 // pred_check_branch
        %971 = sbr.rel (%p969) target = $region48
      $region47: #{dsfe_forward.1} parent=31 // pred_region
        %s972 = scalar_lea.vmem [#allocation2], %s215
        %v973 = vld [vmem:[%s972] sm:$0xff]
        %v974 = vld [vmem:[%s972 + $0x8] sm:$0xff]
        %v975 = vld [vmem:[%s972 + $0x10] sm:$0xff]
        %v976 = vld [vmem:[%s972 + $0x18] sm:$0xff]
        %v977 = vld [vmem:[#allocation5] sm:$0x1]
        %v979 = vlaneseq
        %v980 = vshrl.u32 %v979, 7
        %v981 = vsub.s32 0, %v980
        %v982 = vrot.slane %v977, %v981
        %v984 = vmul.f32 %v973, %v982
        %v985 = vmul.f32 %v974, %v982
        %v986 = vmul.f32 %v975, %v982
        %v987 = vmul.f32 %v976, %v982
        %v988 = vld [vmem:[#allocation6] sm:$0x1]
        %v990 = vlaneseq
        %v991 = vshrl.u32 %v990, 7
        %v992 = vsub.s32 0, %v991
        %v993 = vrot.slane %v988, %v992
        %v995 = vadd.f32 %v984, %v993
        %v996 = vadd.f32 %v985, %v993
        %v997 = vadd.f32 %v986, %v993
        %v998 = vadd.f32 %v987, %v993
        %v999 = vmul.f32 %v995, 0.01
        %v1000 = vmul.f32 %v996, 0.01
        %v1001 = vmul.f32 %v997, 0.01
        %v1002 = vmul.f32 %v998, 0.01
        %v1003 = vmax.f32 %v995, %v999
        %v1004 = vmax.f32 %v996, %v1000
        %v1005 = vmax.f32 %v997, %v1001
        %v1006 = vmax.f32 %v998, %v1002
        %1007 = vst [vmem:[%s212] sm:$0xff] %v1003
        %1008 = vst [vmem:[%s212 + $0x8] sm:$0xff] %v1004
        %1009 = vst [vmem:[%s212 + $0x10] sm:$0xff] %v1005
        %1010 = vst [vmem:[%s212 + $0x18] sm:$0xff] %v1006
      $region48: #{dsfe_forward.1} parent=31 // pred_fallthru
        _
      %s1011 = smul.u32 %s18, %s19
      %s1012 = smul.u32 4, %s1011
      %p1013 = scmp.lt.s32.totalorder %s1012, 15
      %s1014 = scalar_select %p1013, %s1012, 15
      %s1015 = smul.addr %s1014, 8
      %s1016 = scalar_lea.vmem %s3, %s1015
      // Predicated region
      $region49: #{dsfe_forward.1} parent=31 // pred_check
        %p1017 = pneg %p120
      $region50: #{dsfe_forward.1} parent=31 // pred_check_branch
        %1019 = sbr.rel (%p1017) target = $region52
      $region51: #{dsfe_forward.1} parent=31 // pred_region
        %s1020 = smul.u32 %s18, %s19
        %s1021 = smul.u32 4, %s1020
      $region52: #{dsfe_forward.1} parent=31 // pred_fallthru
        _
    $region32: #{dsfe_forward.1} parent=5 // pred_fallthru
      _
    %p1022 = scmp.le.s32.totalorder 2, %s9
    // Predicated region
    $region53: #{dsfe_forward.1} parent=5 // pred_check
      %p1023 = pneg %p1022
    $region54: #{dsfe_forward.1} parent=5 // pred_check_branch
      %1025 = sbr.rel (%p1023) target = $region56
    $region55: #{dsfe_forward.1} parent=5 // pred_region
      %s1026 = ssub.s32 %s9, 2
      // Predicated region
      $region57: #{dsfe_forward.1} parent=55 // pred_check
        %p1027 = pneg %p126
      $region58: #{dsfe_forward.1} parent=55 // pred_check_branch
        %1029 = sbr.rel (%p1027) target = $region60
      $region59: #{dsfe_forward.1} parent=55 // pred_region
        %s1030 = smul.u32 %s20, %s21
        %s1031 = smul.u32 4, %s1030
        %p1032 = scmp.lt.s32.totalorder %s1031, 15
        %s1033 = scalar_select %p1032, %s1031, 15
        %s1034 = smul.addr %s1033, 8
        %s1035 = scalar_lea.vmem %s3, %s1034
      $region60: #{dsfe_forward.1} parent=55 // pred_fallthru
        _
    $region56: #{dsfe_forward.1} parent=5 // pred_fallthru
      _
  $region6: #{dsfe_forward.1} parent=0 // loop_footer
    %s13 = sadd.s32 1, %s9
  $region7: #{dsfe_forward.1} parent=0 // loop_footer_branch
    %8 = sbr.rel target = $region3
  $region8: #{dsfe_forward.1} parent=0 // loop_exit
    _

</llo_original>
